<compile_context>
chip_gen: v5e
topology: v5e:2x2
jax: 0.10.0
libtpu: 0.0.40
codegen_flags: <defaults>
</compile_context>

<pallas_src>
import jax
import jax.numpy as jnp
from jax.experimental import pallas as pl
from jax.experimental.pallas import tpu as pltpu

_LANES = 128
# Leading "parallel" grid axis: split across the 2 TensorCores on v7x; on
# single-TC chips (v5e/v6e) it simply runs as a short serial outer loop.
_NUM_CORES = 2


def _cdiv(a, b):
    return -(-a // b)


def _round_up(x, m):
    return _cdiv(x, m) * m


def _sublane_multiple(dtype):
    # Minimum second-to-last block dim: 8 for 4-byte, 16 for 2-byte, 32 for 1-byte.
    return {4: 8, 2: 16, 1: 32}.get(jnp.dtype(dtype).itemsize, 8)


def _as_lane_rows(x, rows, pad_value=0):
    """Flatten x and view it as [rows, 128]. Free bitcast when x.size % 128 == 0."""
    flat = x.reshape(-1)
    pad = rows * _LANES - flat.shape[0]
    if pad:
        # TODO(synk): this single small pad still materializes one copy for
        # non-128-aligned sizes; could be removed via
        # CompilerParams(allow_input_fusion=...) if it ever matters.
        flat = jnp.pad(flat, (0, pad), constant_values=pad_value)
    return flat.reshape(rows, _LANES)


def _volsdf_fused_sums(rgb_pred, rgb_gt, grad_theta, *,
                       max_tile_rows=1024, max_tile_g_rows=1024):
    """Returns (sum |pred - gt| over all elements, sum (||g||_2 - 1)^2 over rows)."""
    total = rgb_pred.size
    assert rgb_gt.size == total, "rgb prediction / ground-truth size mismatch"
    m, gc = grad_theta.shape
    assert gc == 3, "grad_theta must be [M, 3]"

    # ---- lane-dense L1 operands: [rows_r, 128] views --------------------------------
    rows_r = _cdiv(total, _LANES)
    pred2d = _as_lane_rows(rgb_pred, rows_r)            # zero pad -> 0 L1 contribution
    gt2d = _as_lane_rows(rgb_gt, rows_r)

    # ---- lane+sublane-dense eikonal operands: gx/gy/gz as [rows_g, 128] -------------
    rows_g = _cdiv(m, _LANES)
    gx2d = _as_lane_rows(grad_theta[:, 0], rows_g, pad_value=1)   # (1,0,0): norm=1 -> 0
    gy2d = _as_lane_rows(grad_theta[:, 1], rows_g)
    gz2d = _as_lane_rows(grad_theta[:, 2], rows_g)

    # ---- tiling: never round the data up to a tile multiple; mask the last tile -----
    sub_r = max(_sublane_multiple(pred2d.dtype), _sublane_multiple(gt2d.dtype))
    sub_g = _sublane_multiple(gx2d.dtype)
    tile_r = min(max_tile_rows, _round_up(rows_r, sub_r))
    tile_g = min(max_tile_g_rows, _round_up(rows_g, sub_g))

    t_l1 = _cdiv(rows_r, tile_r)          # total row tiles, L1 stream
    t_g = _cdiv(rows_g, tile_g)           # total row tiles, eikonal stream
    cl1 = _cdiv(t_l1, _NUM_CORES)         # per-core tile counts
    cg = _cdiv(t_g, _NUM_CORES)
    n_steps = max(cl1, cg)

    l1_ragged = (rows_r % tile_r) != 0
    g_ragged = (rows_g % tile_g) != 0

    def kernel(pred_ref, gt_ref, gx_ref, gy_ref, gz_ref,
               rgb_out, eik_out, acc_rgb, acc_eik):
        c = pl.program_id(0)              # core slice
        i = pl.program_id(1)              # step within this core's slice

        @pl.when(i == 0)
        def _():
            acc_rgb[...] = jnp.zeros_like(acc_rgb)
            acc_eik[...] = jnp.zeros_like(acc_eik)

        l1_blk = c * cl1 + i
        g_blk = c * cg + i

        # ---------------- L1 partial sums ----------------
        @pl.when(jnp.logical_and(i < cl1, l1_blk < t_l1))
        def _():
            d = jnp.abs(pred_ref[...].astype(jnp.float32)
                        - gt_ref[...].astype(jnp.float32))

            def acc(val):
                # strip-sum the tile into one vreg-sized accumulator
                acc_rgb[...] += val.reshape(tile_r // 8, 8, _LANES).sum(axis=0)

            if l1_ragged:
                is_last = l1_blk == t_l1 - 1

                @pl.when(is_last)
                def _():
                    row = (jax.lax.broadcasted_iota(jnp.int32, (tile_r, _LANES), 0)
                           + l1_blk * tile_r)
                    acc(jnp.where(row < rows_r, d, 0.0))

                @pl.when(jnp.logical_not(is_last))
                def _():
                    acc(d)
            else:
                acc(d)

        # ---------------- eikonal partial sums ----------------
        @pl.when(jnp.logical_and(i < cg, g_blk < t_g))
        def _():
            gx = gx_ref[...].astype(jnp.float32)
            gy = gy_ref[...].astype(jnp.float32)
            gz = gz_ref[...].astype(jnp.float32)
            e = (jnp.sqrt(gx * gx + gy * gy + gz * gz) - 1.0) ** 2

            def acc(val):
                acc_eik[...] += val.reshape(tile_g // 8, 8, _LANES).sum(axis=0)

            if g_ragged:
                is_last = g_blk == t_g - 1

                @pl.when(is_last)
                def _():
                    row = (jax.lax.broadcasted_iota(jnp.int32, (tile_g, _LANES), 0)
                           + g_blk * tile_g)
                    acc(jnp.where(row < rows_g, e, 0.0))

                @pl.when(jnp.logical_not(is_last))
                def _():
                    acc(e)
            else:
                acc(e)

        # -------- write this core's (8,128) partial-sum blocks once --------
        @pl.when(i == pl.num_programs(1) - 1)
        def _():
            rgb_out[...] = acc_rgb[...]
            eik_out[...] = acc_eik[...]

    # Clamped index maps: steps past a stream's tile count just re-point at the
    # last block (no re-DMA since the block index is unchanged); the pl.when
    # guards above prevent any double counting.
    l1_map = lambda c, i: (jnp.minimum(c * cl1 + i, t_l1 - 1), 0)
    g_map = lambda c, i: (jnp.minimum(c * cg + i, t_g - 1), 0)
    out_map = lambda c, i: (c, 0)

    itm = lambda a: jnp.dtype(a.dtype).itemsize
    cost = pl.CostEstimate(
        flops=3 * rows_r * _LANES + 9 * rows_g * _LANES,
        transcendentals=rows_g * _LANES,
        bytes_accessed=(rows_r * _LANES * (itm(pred2d) + itm(gt2d))
                        + 3 * rows_g * _LANES * itm(gx2d)
                        + 2 * _NUM_CORES * 8 * _LANES * 4),
    )

    rgb_part, eik_part = pl.pallas_call(
        kernel,
        out_shape=(jax.ShapeDtypeStruct((_NUM_CORES * 8, _LANES), jnp.float32),
                   jax.ShapeDtypeStruct((_NUM_CORES * 8, _LANES), jnp.float32)),
        grid_spec=pltpu.PrefetchScalarGridSpec(
            num_scalar_prefetch=0,
            grid=(_NUM_CORES, n_steps),
            in_specs=[
                pl.BlockSpec((tile_r, _LANES), l1_map),
                pl.BlockSpec((tile_r, _LANES), l1_map),
                pl.BlockSpec((tile_g, _LANES), g_map),
                pl.BlockSpec((tile_g, _LANES), g_map),
                pl.BlockSpec((tile_g, _LANES), g_map),
            ],
            out_specs=[
                pl.BlockSpec((8, _LANES), out_map),
                pl.BlockSpec((8, _LANES), out_map),
            ],
            scratch_shapes=[
                pltpu.VMEM((8, _LANES), jnp.float32),
                pltpu.VMEM((8, _LANES), jnp.float32),
            ],
        ),
        compiler_params=pltpu.CompilerParams(
            dimension_semantics=("parallel", "arbitrary")),
        cost_estimate=cost,
    )(pred2d, gt2d, gx2d, gy2d, gz2d)

    # Tiny (2 x 8 x 128) per-core partials -> scalars; done by XLA in the wrapper.
    return jnp.sum(rgb_part), jnp.sum(eik_part)


# ---------------------------------------------------------------------------
# VolSDFLoss wrapper (glue: reshape, normalization, weighted combination).
# rgb_loss fixed to L1Loss(reduction='mean') as in the VolSDF config default.
# ---------------------------------------------------------------------------
class VolSDFLoss:
    def __init__(self, eikonal_weight=0.1):
        self.eikonal_weight = float(eikonal_weight)

    def __call__(self, model_outputs, ground_truth):
        rgb_values = model_outputs["rgb_values"]                       # [N, 3]
        rgb_gt = ground_truth["rgb"].reshape(-1, rgb_values.shape[-1])  # -> [N, 3]
        total = rgb_values.size

        has_grad = "grad_theta" in model_outputs
        if has_grad:
            grad_theta = model_outputs["grad_theta"]                    # [M, 3]
        else:
            # dummy unit vector -> contributes exactly 0; eikonal loss forced to 0 below
            grad_theta = jnp.array([[1.0, 0.0, 0.0]], jnp.float32)
        m = grad_theta.shape[0]

        rgb_sum, eik_sum = _volsdf_fused_sums(rgb_values, rgb_gt, grad_theta)

        rgb_loss = rgb_sum / float(total)                # L1 mean over all elements
        eikonal_loss = (eik_sum / float(m)) if has_grad else jnp.float32(0.0)
        loss = rgb_loss + jnp.float32(self.eikonal_weight) * eikonal_loss
        return {"loss": loss, "rgb_loss": rgb_loss, "eikonal_loss": eikonal_loss}


if __name__ == "__main__":
    key = jax.random.PRNGKey(0)
    k1, k2, k3 = jax.random.split(key, 3)

    # --- main test: 128-aligned rgb (zero-copy fast path), ragged eikonal M ---
    B, P = 2, 128          # N = 256 rays -> total = 768 elements (divisible by 128)
    N = B * P
    M = 300                # deliberately not a multiple of 128

    rgb_values = jax.random.uniform(k1, (N, 3), dtype=jnp.float32)
    rgb_gt = jax.random.uniform(k2, (B, P, 3), dtype=jnp.float32)
    grad_theta = jax.random.normal(k3, (M, 3), dtype=jnp.float32)

    loss_fn = VolSDFLoss(eikonal_weight=0.1)
    out = loss_fn({"rgb_values": rgb_values, "grad_theta": grad_theta},
                  {"rgb": rgb_gt})
    jax.block_until_ready(out["loss"])

    ref_rgb = jnp.mean(jnp.abs(rgb_values - rgb_gt.reshape(-1, 3)))
    ref_eik = jnp.mean((jnp.linalg.norm(grad_theta, ord=2, axis=1) - 1.0) ** 2)
    ref_loss = ref_rgb + 0.1 * ref_eik
    assert jnp.allclose(out["rgb_loss"], ref_rgb, rtol=1e-5, atol=1e-5)
    assert jnp.allclose(out["eikonal_loss"], ref_eik, rtol=1e-5, atol=1e-5)
    assert jnp.allclose(out["loss"], ref_loss, rtol=1e-5, atol=1e-5)

    # --- ragged rgb path (total % 128 != 0) with bf16 inputs kept narrow -------
    N2, M2 = 100, 37
    rgb2 = jax.random.uniform(k1, (N2, 3), dtype=jnp.float32).astype(jnp.bfloat16)
    gt2 = jax.random.uniform(k2, (N2, 3), dtype=jnp.float32).astype(jnp.bfloat16)
    g2 = jax.random.normal(k3, (M2, 3), dtype=jnp.float32)
    out2 = loss_fn({"rgb_values": rgb2, "grad_theta": g2}, {"rgb": gt2})
    jax.block_until_ready(out2["loss"])
    ref_rgb2 = jnp.mean(jnp.abs(rgb2.astype(jnp.float32) - gt2.astype(jnp.float32)))
    ref_eik2 = jnp.mean((jnp.linalg.norm(g2, ord=2, axis=1) - 1.0) ** 2)
    assert jnp.allclose(out2["rgb_loss"], ref_rgb2, rtol=1e-4, atol=1e-4)
    assert jnp.allclose(out2["eikonal_loss"], ref_eik2, rtol=1e-5, atol=1e-5)

    # --- no-grad_theta branch: eikonal loss exactly 0, rgb loss unchanged ------
    out3 = loss_fn({"rgb_values": rgb_values}, {"rgb": rgb_gt})
    jax.block_until_ready(out3["loss"])
    assert jnp.allclose(out3["eikonal_loss"], 0.0)
    assert jnp.allclose(out3["rgb_loss"], ref_rgb, rtol=1e-5, atol=1e-5)

    print("KERNEL_OK")
</pallas_src>

<mosaic_0001>
module attributes {stable_mosaic.version = 11 : i64} {
  func.func @kernel(%arg0: i32, %arg1: i32, %arg2: memref<8x128xf32, #tpu.memory_space<vmem>>, %arg3: memref<8x128xf32, #tpu.memory_space<vmem>>, %arg4: memref<8x128xf32, #tpu.memory_space<vmem>>, %arg5: memref<8x128xf32, #tpu.memory_space<vmem>>, %arg6: memref<8x128xf32, #tpu.memory_space<vmem>>, %arg7: memref<8x128xf32, #tpu.memory_space<vmem>>, %arg8: memref<8x128xf32, #tpu.memory_space<vmem>>, %arg9: memref<8x128xf32, #tpu.memory_space<vmem>>, %arg10: memref<8x128xf32, #tpu.memory_space<vmem>>) attributes {dimension_semantics = [#tpu.dimension_semantics<parallel>, #tpu.dimension_semantics<arbitrary>], iteration_bounds = array<i64: 2, 1>, scalar_prefetch = 0 : i64, scratch_operands = 2 : i64, tpu.core_type = #tpu.core_type<tc>, window_params = [{transform_indices = @transform_0, window_bounds = array<i64: 8, 128>}, {transform_indices = @transform_1, window_bounds = array<i64: 8, 128>}, {transform_indices = @transform_2, window_bounds = array<i64: 8, 128>}, {transform_indices = @transform_3, window_bounds = array<i64: 8, 128>}, {transform_indices = @transform_4, window_bounds = array<i64: 8, 128>}, {transform_indices = @transform_5, window_bounds = array<i64: 8, 128>}, {transform_indices = @transform_6, window_bounds = array<i64: 8, 128>}]} {
    %c0_i32 = arith.constant 0 : i32
    %0 = arith.cmpi eq, %arg1, %c0_i32 : i32
    %1 = arith.extui %0 : i1 to i32
    %c0_i32_0 = arith.constant 0 : i32
    %2 = arith.cmpi ne, %1, %c0_i32_0 : i32
    scf.if %2 {
      %cst = arith.constant 0.000000e+00 : f32
      %20 = vector.broadcast %cst : f32 to vector<8x128xf32>
      %c0 = arith.constant 0 : index
      %c0_10 = arith.constant 0 : index
      %21 = vector.load %arg9[%c0, %c0_10] : memref<8x128xf32, #tpu.memory_space<vmem>>, vector<8x128xf32>
      tpu.vector_store %arg9[%c0, %c0_10], %20 {strides = array<i32>} : memref<8x128xf32, #tpu.memory_space<vmem>>, vector<8x128xf32>,
      %cst_11 = arith.constant 0.000000e+00 : f32
      %22 = vector.broadcast %cst_11 : f32 to vector<8x128xf32>
      %c0_12 = arith.constant 0 : index
      %c0_13 = arith.constant 0 : index
      %23 = vector.load %arg10[%c0_12, %c0_13] : memref<8x128xf32, #tpu.memory_space<vmem>>, vector<8x128xf32>
      tpu.vector_store %arg10[%c0_12, %c0_13], %22 {strides = array<i32>} : memref<8x128xf32, #tpu.memory_space<vmem>>, vector<8x128xf32>,
    } else {
    }
    %c1_i32 = arith.constant 1 : i32
    %3 = arith.muli %arg0, %c1_i32 : i32
    %4 = arith.addi %3, %arg1 : i32
    %c1_i32_1 = arith.constant 1 : i32
    %5 = arith.muli %arg0, %c1_i32_1 : i32
    %6 = arith.addi %5, %arg1 : i32
    %c1_i32_2 = arith.constant 1 : i32
    %7 = arith.cmpi slt, %arg1, %c1_i32_2 : i32
    %c1_i32_3 = arith.constant 1 : i32
    %8 = arith.cmpi slt, %4, %c1_i32_3 : i32
    %9 = arith.andi %7, %8 : i1
    %10 = arith.extui %9 : i1 to i32
    %c0_i32_4 = arith.constant 0 : i32
    %11 = arith.cmpi ne, %10, %c0_i32_4 : i32
    scf.if %11 {
      %c0 = arith.constant 0 : index
      %c0_10 = arith.constant 0 : index
      %20 = vector.load %arg2[%c0, %c0_10] : memref<8x128xf32, #tpu.memory_space<vmem>>, vector<8x128xf32>
      %c0_11 = arith.constant 0 : index
      %c0_12 = arith.constant 0 : index
      %21 = vector.load %arg3[%c0_11, %c0_12] : memref<8x128xf32, #tpu.memory_space<vmem>>, vector<8x128xf32>
      %22 = arith.subf %20, %21 : vector<8x128xf32>
      %23 = math.absf %22 : vector<8x128xf32>
      %c0_i32_13 = arith.constant 0 : i32
      %24 = arith.cmpi eq, %4, %c0_i32_13 : i32
      %25 = arith.extui %24 : i1 to i32
      %c0_i32_14 = arith.constant 0 : i32
      %26 = arith.cmpi ne, %25, %c0_i32_14 : i32
      scf.if %26 {
        %30 = tpu.iota {dimensions = array<i32: 0>} : vector<8x128xi32>
        %c8_i32 = arith.constant 8 : i32
        %31 = arith.muli %4, %c8_i32 : i32
        %32 = vector.broadcast %31 : i32 to vector<8x128xi32>
        %33 = arith.addi %30, %32 : vector<8x128xi32>
        %c6_i32 = arith.constant 6 : i32
        %34 = vector.broadcast %c6_i32 : i32 to vector<8x128xi32>
        %35 = arith.cmpi slt, %33, %34 : vector<8x128xi32>
        %cst = arith.constant 0.000000e+00 : f32
        %36 = vector.broadcast %cst : f32 to vector<8x128xf32>
        %37 = arith.select %35, %23, %36 : vector<8x128xi1>, vector<8x128xf32>
        %c0_16 = arith.constant 0 : index
        %c0_17 = arith.constant 0 : index
        %38 = vector.load %arg9[%c0_16, %c0_17] : memref<8x128xf32, #tpu.memory_space<vmem>>, vector<8x128xf32>
        %39 = vector.shape_cast %37 : vector<8x128xf32> to vector<1x8x128xf32>
        %cst_18 = arith.constant dense<0.000000e+00> : vector<8x128xf32>
        %40 = vector.multi_reduction <add>, %39, %cst_18 [0] : vector<1x8x128xf32> to vector<8x128xf32>
        %41 = arith.addf %38, %40 : vector<8x128xf32>
        %c0_19 = arith.constant 0 : index
        %c0_20 = arith.constant 0 : index
        %42 = vector.load %arg9[%c0_19, %c0_20] : memref<8x128xf32, #tpu.memory_space<vmem>>, vector<8x128xf32>
        tpu.vector_store %arg9[%c0_19, %c0_20], %41 {strides = array<i32>} : memref<8x128xf32, #tpu.memory_space<vmem>>, vector<8x128xf32>,
      } else {
      }
      %true = arith.constant true
      %27 = arith.xori %24, %true : i1
      %28 = arith.extui %27 : i1 to i32
      %c0_i32_15 = arith.constant 0 : i32
      %29 = arith.cmpi ne, %28, %c0_i32_15 : i32
      scf.if %29 {
        %c0_16 = arith.constant 0 : index
        %c0_17 = arith.constant 0 : index
        %30 = vector.load %arg9[%c0_16, %c0_17] : memref<8x128xf32, #tpu.memory_space<vmem>>, vector<8x128xf32>
        %31 = vector.shape_cast %23 : vector<8x128xf32> to vector<1x8x128xf32>
        %cst = arith.constant dense<0.000000e+00> : vector<8x128xf32>
        %32 = vector.multi_reduction <add>, %31, %cst [0] : vector<1x8x128xf32> to vector<8x128xf32>
        %33 = arith.addf %30, %32 : vector<8x128xf32>
        %c0_18 = arith.constant 0 : index
        %c0_19 = arith.constant 0 : index
        %34 = vector.load %arg9[%c0_18, %c0_19] : memref<8x128xf32, #tpu.memory_space<vmem>>, vector<8x128xf32>
        tpu.vector_store %arg9[%c0_18, %c0_19], %33 {strides = array<i32>} : memref<8x128xf32, #tpu.memory_space<vmem>>, vector<8x128xf32>,
      } else {
      }
    } else {
    }
    %c1_i32_5 = arith.constant 1 : i32
    %12 = arith.cmpi slt, %arg1, %c1_i32_5 : i32
    %c1_i32_6 = arith.constant 1 : i32
    %13 = arith.cmpi slt, %6, %c1_i32_6 : i32
    %14 = arith.andi %12, %13 : i1
    %15 = arith.extui %14 : i1 to i32
    %c0_i32_7 = arith.constant 0 : i32
    %16 = arith.cmpi ne, %15, %c0_i32_7 : i32
    scf.if %16 {
      %c0 = arith.constant 0 : index
      %c0_10 = arith.constant 0 : index
      %20 = vector.load %arg4[%c0, %c0_10] : memref<8x128xf32, #tpu.memory_space<vmem>>, vector<8x128xf32>
      %c0_11 = arith.constant 0 : index
      %c0_12 = arith.constant 0 : index
      %21 = vector.load %arg5[%c0_11, %c0_12] : memref<8x128xf32, #tpu.memory_space<vmem>>, vector<8x128xf32>
      %c0_13 = arith.constant 0 : index
      %c0_14 = arith.constant 0 : index
      %22 = vector.load %arg6[%c0_13, %c0_14] : memref<8x128xf32, #tpu.memory_space<vmem>>, vector<8x128xf32>
      %23 = arith.mulf %20, %20 : vector<8x128xf32>
      %24 = arith.mulf %21, %21 : vector<8x128xf32>
      %25 = arith.addf %23, %24 : vector<8x128xf32>
      %26 = arith.mulf %22, %22 : vector<8x128xf32>
      %27 = arith.addf %25, %26 : vector<8x128xf32>
      %28 = math.sqrt %27 : vector<8x128xf32>
      %cst = arith.constant 1.000000e+00 : f32
      %29 = vector.broadcast %cst : f32 to vector<8x128xf32>
      %30 = arith.subf %28, %29 : vector<8x128xf32>
      %31 = arith.mulf %30, %30 : vector<8x128xf32>
      %c0_i32_15 = arith.constant 0 : i32
      %32 = arith.cmpi eq, %6, %c0_i32_15 : i32
      %33 = arith.extui %32 : i1 to i32
      %c0_i32_16 = arith.constant 0 : i32
      %34 = arith.cmpi ne, %33, %c0_i32_16 : i32
      scf.if %34 {
        %38 = tpu.iota {dimensions = array<i32: 0>} : vector<8x128xi32>
        %c8_i32 = arith.constant 8 : i32
        %39 = arith.muli %6, %c8_i32 : i32
        %40 = vector.broadcast %39 : i32 to vector<8x128xi32>
        %41 = arith.addi %38, %40 : vector<8x128xi32>
        %c3_i32 = arith.constant 3 : i32
        %42 = vector.broadcast %c3_i32 : i32 to vector<8x128xi32>
        %43 = arith.cmpi slt, %41, %42 : vector<8x128xi32>
        %cst_18 = arith.constant 0.000000e+00 : f32
        %44 = vector.broadcast %cst_18 : f32 to vector<8x128xf32>
        %45 = arith.select %43, %31, %44 : vector<8x128xi1>, vector<8x128xf32>
        %c0_19 = arith.constant 0 : index
        %c0_20 = arith.constant 0 : index
        %46 = vector.load %arg10[%c0_19, %c0_20] : memref<8x128xf32, #tpu.memory_space<vmem>>, vector<8x128xf32>
        %47 = vector.shape_cast %45 : vector<8x128xf32> to vector<1x8x128xf32>
        %cst_21 = arith.constant dense<0.000000e+00> : vector<8x128xf32>
        %48 = vector.multi_reduction <add>, %47, %cst_21 [0] : vector<1x8x128xf32> to vector<8x128xf32>
        %49 = arith.addf %46, %48 : vector<8x128xf32>
        %c0_22 = arith.constant 0 : index
        %c0_23 = arith.constant 0 : index
        %50 = vector.load %arg10[%c0_22, %c0_23] : memref<8x128xf32, #tpu.memory_space<vmem>>, vector<8x128xf32>
        tpu.vector_store %arg10[%c0_22, %c0_23], %49 {strides = array<i32>} : memref<8x128xf32, #tpu.memory_space<vmem>>, vector<8x128xf32>,
      } else {
      }
      %true = arith.constant true
      %35 = arith.xori %32, %true : i1
      %36 = arith.extui %35 : i1 to i32
      %c0_i32_17 = arith.constant 0 : i32
      %37 = arith.cmpi ne, %36, %c0_i32_17 : i32
      scf.if %37 {
        %c0_18 = arith.constant 0 : index
        %c0_19 = arith.constant 0 : index
        %38 = vector.load %arg10[%c0_18, %c0_19] : memref<8x128xf32, #tpu.memory_space<vmem>>, vector<8x128xf32>
        %39 = vector.shape_cast %31 : vector<8x128xf32> to vector<1x8x128xf32>
        %cst_20 = arith.constant dense<0.000000e+00> : vector<8x128xf32>
        %40 = vector.multi_reduction <add>, %39, %cst_20 [0] : vector<1x8x128xf32> to vector<8x128xf32>
        %41 = arith.addf %38, %40 : vector<8x128xf32>
        %c0_21 = arith.constant 0 : index
        %c0_22 = arith.constant 0 : index
        %42 = vector.load %arg10[%c0_21, %c0_22] : memref<8x128xf32, #tpu.memory_space<vmem>>, vector<8x128xf32>
        tpu.vector_store %arg10[%c0_21, %c0_22], %41 {strides = array<i32>} : memref<8x128xf32, #tpu.memory_space<vmem>>, vector<8x128xf32>,
      } else {
      }
    } else {
    }
    %c0_i32_8 = arith.constant 0 : i32
    %17 = arith.cmpi eq, %arg1, %c0_i32_8 : i32
    %18 = arith.extui %17 : i1 to i32
    %c0_i32_9 = arith.constant 0 : i32
    %19 = arith.cmpi ne, %18, %c0_i32_9 : i32
    scf.if %19 {
      %c0 = arith.constant 0 : index
      %c0_10 = arith.constant 0 : index
      %20 = vector.load %arg9[%c0, %c0_10] : memref<8x128xf32, #tpu.memory_space<vmem>>, vector<8x128xf32>
      %c0_11 = arith.constant 0 : index
      %c0_12 = arith.constant 0 : index
      %21 = vector.load %arg7[%c0_11, %c0_12] : memref<8x128xf32, #tpu.memory_space<vmem>>, vector<8x128xf32>
      tpu.vector_store %arg7[%c0_11, %c0_12], %20 {strides = array<i32>} : memref<8x128xf32, #tpu.memory_space<vmem>>, vector<8x128xf32>,
      %c0_13 = arith.constant 0 : index
      %c0_14 = arith.constant 0 : index
      %22 = vector.load %arg10[%c0_13, %c0_14] : memref<8x128xf32, #tpu.memory_space<vmem>>, vector<8x128xf32>
      %c0_15 = arith.constant 0 : index
      %c0_16 = arith.constant 0 : index
      %23 = vector.load %arg8[%c0_15, %c0_16] : memref<8x128xf32, #tpu.memory_space<vmem>>, vector<8x128xf32>
      tpu.vector_store %arg8[%c0_15, %c0_16], %22 {strides = array<i32>} : memref<8x128xf32, #tpu.memory_space<vmem>>, vector<8x128xf32>,
    } else {
    }
    return
  }
  func.func @transform_0(%arg0: i32, %arg1: i32) -> (i32, i32) {
    %c1_i32 = arith.constant 1 : i32
    %0 = arith.muli %arg0, %c1_i32 : i32
    %1 = arith.addi %0, %arg1 : i32
    %c0_i32 = arith.constant 0 : i32
    %2 = arith.minsi %1, %c0_i32 : i32
    %c0_i32_0 = arith.constant 0 : i32
    %c0_i32_1 = arith.constant 0 : i32
    return %2, %c0_i32_0 : i32, i32
  }
  func.func @transform_1(%arg0: i32, %arg1: i32) -> (i32, i32) {
    %c1_i32 = arith.constant 1 : i32
    %0 = arith.muli %arg0, %c1_i32 : i32
    %1 = arith.addi %0, %arg1 : i32
    %c0_i32 = arith.constant 0 : i32
    %2 = arith.minsi %1, %c0_i32 : i32
    %c0_i32_0 = arith.constant 0 : i32
    %c0_i32_1 = arith.constant 0 : i32
    return %2, %c0_i32_0 : i32, i32
  }
  func.func @transform_2(%arg0: i32, %arg1: i32) -> (i32, i32) {
    %c1_i32 = arith.constant 1 : i32
    %0 = arith.muli %arg0, %c1_i32 : i32
    %1 = arith.addi %0, %arg1 : i32
    %c0_i32 = arith.constant 0 : i32
    %2 = arith.minsi %1, %c0_i32 : i32
    %c0_i32_0 = arith.constant 0 : i32
    %c0_i32_1 = arith.constant 0 : i32
    return %2, %c0_i32_0 : i32, i32
  }
  func.func @transform_3(%arg0: i32, %arg1: i32) -> (i32, i32) {
    %c1_i32 = arith.constant 1 : i32
    %0 = arith.muli %arg0, %c1_i32 : i32
    %1 = arith.addi %0, %arg1 : i32
    %c0_i32 = arith.constant 0 : i32
    %2 = arith.minsi %1, %c0_i32 : i32
    %c0_i32_0 = arith.constant 0 : i32
    %c0_i32_1 = arith.constant 0 : i32
    return %2, %c0_i32_0 : i32, i32
  }
  func.func @transform_4(%arg0: i32, %arg1: i32) -> (i32, i32) {
    %c1_i32 = arith.constant 1 : i32
    %0 = arith.muli %arg0, %c1_i32 : i32
    %1 = arith.addi %0, %arg1 : i32
    %c0_i32 = arith.constant 0 : i32
    %2 = arith.minsi %1, %c0_i32 : i32
    %c0_i32_0 = arith.constant 0 : i32
    %c0_i32_1 = arith.constant 0 : i32
    return %2, %c0_i32_0 : i32, i32
  }
  func.func @transform_5(%arg0: i32, %arg1: i32) -> (i32, i32) {
    %c0_i32 = arith.constant 0 : i32
    %c0_i32_0 = arith.constant 0 : i32
    return %arg0, %c0_i32 : i32, i32
  }
  func.func @transform_6(%arg0: i32, %arg1: i32) -> (i32, i32) {
    %c0_i32 = arith.constant 0 : i32
    %c0_i32_0 = arith.constant 0 : i32
    return %arg0, %c0_i32 : i32, i32
  }
}

</mosaic_0001>

<llo_original>
// kernel: tpu_custom_call.1
$region0: #{tpu_custom_call.1}
  #allocation0 [shape = 'u32[]', space=smem, size = 0x4, offset = 0x4, fixed_abs, tag = 'smem constant byte address 0x4 - core index']
  #allocation1 [shape = 'u32[72,128]{1,0:T(1,128)}', space=vmem, size = 0x9000, scoped, tag = 'internal scratch']
  #allocation2 [shape = 'f32[8,128]{1,0:T(8,128)}', space=vmem, size = 0x1000, scoped, tag = 'scratch operand']
  #allocation3 [shape = 'f32[8,128]{1,0:T(8,128)}', space=vmem, size = 0x1000, scoped, tag = 'scratch operand']
  %s0 = inlined_call_operand.hbm [shape: f32[6,128], index: 0, kind: input, shape index: {}]
  %s1 = inlined_call_operand.hbm [shape: f32[6,128], index: 1, kind: input, shape index: {}]
  %s2 = inlined_call_operand.hbm [shape: f32[3,128], index: 2, kind: input, shape index: {}]
  %s3 = inlined_call_operand.hbm [shape: f32[3,128], index: 3, kind: input, shape index: {}]
  %s4 = inlined_call_operand.hbm [shape: f32[3,128], index: 4, kind: input, shape index: {}]
  %s5 = inlined_call_operand.hbm [shape: f32[16,128], index: 5, kind: output, shape index: {0}]
  %s6 = inlined_call_operand.hbm [shape: f32[16,128], index: 6, kind: output, shape index: {1}]
  %7 = xla_tuple %s5, %s6
  %s8 = sld [smem:[#allocation0]]
  $region109: #{tpu_custom_call.1} parent=0
    _
  %s10 = ssub.s32 1, %s8
  %s11 = scalar_select 0, %s10, %s8
  $region1: #{tpu_custom_call.1} parent=0
    #allocation4 [shape = 'u8[8192]{0}', space=vmem, size = 0x2000, scoped, tag = 'input window, operand 0']
    #allocation5 [shape = 's32[2]{0}', space=sflag, size = 0x8, scoped, tag = 'scoped memory for tpu_custom_call.1']
    #allocation6 [shape = 's32[2]{0}', space=sflag, size = 0x8, scoped, tag = 'scoped memory for tpu_custom_call.1']
    #allocation7 [shape = 'u8[8192]{0}', space=vmem, size = 0x2000, scoped, tag = 'input window, operand 1']
    #allocation8 [shape = 's32[2]{0}', space=sflag, size = 0x8, scoped, tag = 'scoped memory for tpu_custom_call.1']
    #allocation9 [shape = 'u8[8192]{0}', space=vmem, size = 0x2000, scoped, tag = 'input window, operand 2']
    #allocation10 [shape = 'u8[8192]{0}', space=vmem, size = 0x2000, scoped, tag = 'input window, operand 3']
    #allocation11 [shape = 's32[2]{0}', space=sflag, size = 0x8, scoped, tag = 'scoped memory for tpu_custom_call.1']
    #allocation12 [shape = 'u8[8192]{0}', space=vmem, size = 0x2000, scoped, tag = 'input window, operand 4']
    #allocation13 [shape = 'u8[8192]{0}', space=vmem, size = 0x2000, scoped, tag = 'output window, operand 0']
    #allocation14 [shape = 'u8[8192]{0}', space=vmem, size = 0x2000, scoped, tag = 'output window, operand 1']
    #allocation15 [shape = 's32[2]{0}', space=sflag, size = 0x8, scoped, tag = 'scoped memory for tpu_custom_call.1']
    %12 = vsyncpa [#allocation5], 0
    %s13 = scalar_lea.sflag [#allocation5], 1
    %14 = vsyncpa %s13, 0
    %15 = vsyncpa [#allocation8], 0
    %s16 = scalar_lea.sflag [#allocation8], 1
    %17 = vsyncpa %s16, 0
    %18 = vsyncpa [#allocation11], 0
    %s19 = scalar_lea.sflag [#allocation11], 1
    %20 = vsyncpa %s19, 0
    %21 = vsyncpa [#allocation6], 0
    %s22 = scalar_lea.sflag [#allocation6], 1
    %23 = vsyncpa %s22, 0
    %24 = vsyncpa [#allocation15], 0
    %s25 = scalar_lea.sflag [#allocation15], 1
    %26 = vsyncpa %s25, 0
    loop: start=0, step=1, limit=4
    $region2: #{tpu_custom_call.1} parent=1 // loop_pre_header
      _
    $region3: #{tpu_custom_call.1} parent=1 // loop_header
      %s28 = sphi 0, %s32
      %p29 = scmp.ge.s32.totalorder %s28, 4
      %s35 = sphi 0, %s47
      %s36 = sphi 0, %s43
      %s37 = sphi 0, %s35
      %s38 = sphi 0, %s36
      %s39 = sphi 0, %s37
      %s40 = sphi 0, %s38
      %s56 = sphi 0, %s58
      %s59 = sphi 0, %s56
      %s60 = sphi 0, %s59
      %s76 = sphi 0, %s60
      %s88 = sphi 0, %s90
      %s91 = sphi 0, %s88
      %s92 = sphi 0, %s91
      %s108 = sphi 0, %s92
      %s120 = sphi 0, %s122
      %s123 = sphi 0, %s120
      %s124 = sphi 0, %s123
      %s140 = sphi 0, %s124
      %s152 = sphi 0, %s154
      %s155 = sphi 0, %s152
      %s156 = sphi 0, %s155
      %s172 = sphi 0, %s156
      %s184 = sphi 0, %s186
      %s187 = sphi 0, %s184
      %s188 = sphi 0, %s187
      %s204 = sphi 0, %s188
      %s210 = sphi 0, %s212
      %s213 = sphi 0, %s210
      %s214 = sphi 0, %s213
      %s230 = sphi 0, %s214
      %s236 = sphi 0, %s238
      %s239 = sphi 0, %s236
      %s240 = sphi 0, %s239
      %s256 = sphi 0, %s240
    $region4: #{tpu_custom_call.1} parent=1 // loop_header_branch
      %31 = sbr.rel (%p29) target = $region8
    $region5: #{tpu_custom_call.1} parent=1 // loop_body
      %s33 = ssub.s32 %s28, 1
      %s34 = ssub.s32 %s28, 2
      %s41 = sadd.s32 1, %s36
      %p42 = scmp.ge.s32.totalorder %s41, 1
      %s43 = scalar_select %p42, 0, %s41
      %s44 = sadd.s32 1, %s35
      %s45 = scalar_select %p42, %s44, %s35
      %p46 = scmp.ge.s32.totalorder %s45, 2
      %s47 = scalar_select %p46, 0, %s45
      %s48 = sadd.s32 %s35, %s36
      %p49 = scmp.lt.s32.totalorder %s48, 0
      %s50 = scalar_select %p49, %s48, 0
      %s51 = sadd.s32 %s47, %s43
      %p52 = scmp.lt.s32.totalorder %s51, 0
      %s53 = scalar_select %p52, %s51, 0
      %s54 = ssub.s32 %s50, %s53
      %p55 = scmp.eq.s32.totalorder %s54, 0
      %s57 = sadd.s32 %s56, 1
      %s58 = scalar_select %p55, %s56, %s57
      %p61 = pneg %p55
      %p62 = scmp.eq.s32.totalorder %s28, 1
      %p63 = por %p61, %p62
      %p64 = scmp.ne.s32.totalorder %s56, %s59
      %p65 = scmp.eq.s32.totalorder %s28, 0
      %p66 = por %p64, %p65
      %p67 = scmp.ne.s32.totalorder %s56, %s59
      %p68 = scmp.eq.s32.totalorder %s33, 1
      %p69 = por %p67, %p68
      %p70 = scmp.ne.s32.totalorder %s59, %s60
      %p71 = scmp.eq.s32.totalorder %s33, 0
      %p72 = por %p70, %p71
      %p73 = scmp.ne.s32.totalorder %s59, %s60
      %p74 = scmp.eq.s32.totalorder %s34, 1
      %p75 = por %p73, %p74
      %p77 = scmp.ne.s32.totalorder %s60, %s76
      %p78 = scmp.eq.s32.totalorder %s34, 0
      %p79 = por %p77, %p78
      %s80 = sadd.s32 %s35, %s36
      %p81 = scmp.lt.s32.totalorder %s80, 0
      %s82 = scalar_select %p81, %s80, 0
      %s83 = sadd.s32 %s47, %s43
      %p84 = scmp.lt.s32.totalorder %s83, 0
      %s85 = scalar_select %p84, %s83, 0
      %s86 = ssub.s32 %s82, %s85
      %p87 = scmp.eq.s32.totalorder %s86, 0
      %s89 = sadd.s32 %s88, 1
      %s90 = scalar_select %p87, %s88, %s89
      %p93 = pneg %p87
      %p94 = scmp.eq.s32.totalorder %s28, 1
      %p95 = por %p93, %p94
      %p96 = scmp.ne.s32.totalorder %s88, %s91
      %p97 = scmp.eq.s32.totalorder %s28, 0
      %p98 = por %p96, %p97
      %p99 = scmp.ne.s32.totalorder %s88, %s91
      %p100 = scmp.eq.s32.totalorder %s33, 1
      %p101 = por %p99, %p100
      %p102 = scmp.ne.s32.totalorder %s91, %s92
      %p103 = scmp.eq.s32.totalorder %s33, 0
      %p104 = por %p102, %p103
      %p105 = scmp.ne.s32.totalorder %s91, %s92
      %p106 = scmp.eq.s32.totalorder %s34, 1
      %p107 = por %p105, %p106
      %p109 = scmp.ne.s32.totalorder %s92, %s108
      %p110 = scmp.eq.s32.totalorder %s34, 0
      %p111 = por %p109, %p110
      %s112 = sadd.s32 %s35, %s36
      %p113 = scmp.lt.s32.totalorder %s112, 0
      %s114 = scalar_select %p113, %s112, 0
      %s115 = sadd.s32 %s47, %s43
      %p116 = scmp.lt.s32.totalorder %s115, 0
      %s117 = scalar_select %p116, %s115, 0
      %s118 = ssub.s32 %s114, %s117
      %p119 = scmp.eq.s32.totalorder %s118, 0
      %s121 = sadd.s32 %s120, 1
      %s122 = scalar_select %p119, %s120, %s121
      %p125 = pneg %p119
      %p126 = scmp.eq.s32.totalorder %s28, 1
      %p127 = por %p125, %p126
      %p128 = scmp.ne.s32.totalorder %s120, %s123
      %p129 = scmp.eq.s32.totalorder %s28, 0
      %p130 = por %p128, %p129
      %p131 = scmp.ne.s32.totalorder %s120, %s123
      %p132 = scmp.eq.s32.totalorder %s33, 1
      %p133 = por %p131, %p132
      %p134 = scmp.ne.s32.totalorder %s123, %s124
      %p135 = scmp.eq.s32.totalorder %s33, 0
      %p136 = por %p134, %p135
      %p137 = scmp.ne.s32.totalorder %s123, %s124
      %p138 = scmp.eq.s32.totalorder %s34, 1
      %p139 = por %p137, %p138
      %p141 = scmp.ne.s32.totalorder %s124, %s140
      %p142 = scmp.eq.s32.totalorder %s34, 0
      %p143 = por %p141, %p142
      %s144 = sadd.s32 %s35, %s36
      %p145 = scmp.lt.s32.totalorder %s144, 0
      %s146 = scalar_select %p145, %s144, 0
      %s147 = sadd.s32 %s47, %s43
      %p148 = scmp.lt.s32.totalorder %s147, 0
      %s149 = scalar_select %p148, %s147, 0
      %s150 = ssub.s32 %s146, %s149
      %p151 = scmp.eq.s32.totalorder %s150, 0
      %s153 = sadd.s32 %s152, 1
      %s154 = scalar_select %p151, %s152, %s153
      %p157 = pneg %p151
      %p158 = scmp.eq.s32.totalorder %s28, 1
      %p159 = por %p157, %p158
      %p160 = scmp.ne.s32.totalorder %s152, %s155
      %p161 = scmp.eq.s32.totalorder %s28, 0
      %p162 = por %p160, %p161
      %p163 = scmp.ne.s32.totalorder %s152, %s155
      %p164 = scmp.eq.s32.totalorder %s33, 1
      %p165 = por %p163, %p164
      %p166 = scmp.ne.s32.totalorder %s155, %s156
      %p167 = scmp.eq.s32.totalorder %s33, 0
      %p168 = por %p166, %p167
      %p169 = scmp.ne.s32.totalorder %s155, %s156
      %p170 = scmp.eq.s32.totalorder %s34, 1
      %p171 = por %p169, %p170
      %p173 = scmp.ne.s32.totalorder %s156, %s172
      %p174 = scmp.eq.s32.totalorder %s34, 0
      %p175 = por %p173, %p174
      %s176 = sadd.s32 %s35, %s36
      %p177 = scmp.lt.s32.totalorder %s176, 0
      %s178 = scalar_select %p177, %s176, 0
      %s179 = sadd.s32 %s47, %s43
      %p180 = scmp.lt.s32.totalorder %s179, 0
      %s181 = scalar_select %p180, %s179, 0
      %s182 = ssub.s32 %s178, %s181
      %p183 = scmp.eq.s32.totalorder %s182, 0
      %s185 = sadd.s32 %s184, 1
      %s186 = scalar_select %p183, %s184, %s185
      %p189 = pneg %p183
      %p190 = scmp.eq.s32.totalorder %s28, 1
      %p191 = por %p189, %p190
      %p192 = scmp.ne.s32.totalorder %s184, %s187
      %p193 = scmp.eq.s32.totalorder %s28, 0
      %p194 = por %p192, %p193
      %p195 = scmp.ne.s32.totalorder %s184, %s187
      %p196 = scmp.eq.s32.totalorder %s33, 1
      %p197 = por %p195, %p196
      %p198 = scmp.ne.s32.totalorder %s187, %s188
      %p199 = scmp.eq.s32.totalorder %s33, 0
      %p200 = por %p198, %p199
      %p201 = scmp.ne.s32.totalorder %s187, %s188
      %p202 = scmp.eq.s32.totalorder %s34, 1
      %p203 = por %p201, %p202
      %p205 = scmp.ne.s32.totalorder %s188, %s204
      %p206 = scmp.eq.s32.totalorder %s34, 0
      %p207 = por %p205, %p206
      %s208 = ssub.s32 %s35, %s47
      %p209 = scmp.eq.s32.totalorder %s208, 0
      %s211 = sadd.s32 %s210, 1
      %s212 = scalar_select %p209, %s210, %s211
      %p215 = pneg %p209
      %p216 = scmp.eq.s32.totalorder %s28, 1
      %p217 = por %p215, %p216
      %p218 = scmp.ne.s32.totalorder %s210, %s213
      %p219 = scmp.eq.s32.totalorder %s28, 0
      %p220 = por %p218, %p219
      %p221 = scmp.ne.s32.totalorder %s210, %s213
      %p222 = scmp.eq.s32.totalorder %s33, 1
      %p223 = por %p221, %p222
      %p224 = scmp.ne.s32.totalorder %s213, %s214
      %p225 = scmp.eq.s32.totalorder %s33, 0
      %p226 = por %p224, %p225
      %p227 = scmp.ne.s32.totalorder %s213, %s214
      %p228 = scmp.eq.s32.totalorder %s34, 1
      %p229 = por %p227, %p228
      %p231 = scmp.ne.s32.totalorder %s214, %s230
      %p232 = scmp.eq.s32.totalorder %s34, 0
      %p233 = por %p231, %p232
      %s234 = ssub.s32 %s35, %s47
      %p235 = scmp.eq.s32.totalorder %s234, 0
      %s237 = sadd.s32 %s236, 1
      %s238 = scalar_select %p235, %s236, %s237
      %p241 = pneg %p235
      %p242 = scmp.eq.s32.totalorder %s28, 1
      %p243 = por %p241, %p242
      %p244 = scmp.ne.s32.totalorder %s236, %s239
      %p245 = scmp.eq.s32.totalorder %s28, 0
      %p246 = por %p244, %p245
      %p247 = scmp.ne.s32.totalorder %s236, %s239
      %p248 = scmp.eq.s32.totalorder %s33, 1
      %p249 = por %p247, %p248
      %p250 = scmp.ne.s32.totalorder %s239, %s240
      %p251 = scmp.eq.s32.totalorder %s33, 0
      %p252 = por %p250, %p251
      %p253 = scmp.ne.s32.totalorder %s239, %s240
      %p254 = scmp.eq.s32.totalorder %s34, 1
      %p255 = por %p253, %p254
      %p257 = scmp.ne.s32.totalorder %s240, %s256
      %p258 = scmp.eq.s32.totalorder %s34, 0
      %p259 = por %p257, %p258
      %p260 = scmp.le.s32.totalorder 1, %s28
      %p261 = scmp.lt.s32.totalorder %s28, 3
      %p262 = pnand %p260, %p261
      %p263 = pneg %p262
      // Predicated region
      $region9: #{tpu_custom_call.1} parent=5 // pred_check
        _
      $region10: #{tpu_custom_call.1} parent=5 // pred_check_branch
        %265 = sbr.rel (%p262) target = $region12
      $region11: #{tpu_custom_call.1} parent=5 // pred_region
        %s266 = ssub.s32 %s28, 1
      $region12: #{tpu_custom_call.1} parent=5 // pred_fallthru
        _
      %p267 = scmp.lt.s32.totalorder %s28, 2
      // Predicated region
      $region13: #{tpu_custom_call.1} parent=5 // pred_check
        %p268 = pneg %p267
      $region14: #{tpu_custom_call.1} parent=5 // pred_check_branch
        %270 = sbr.rel (%p268) target = $region16
      $region15: #{tpu_custom_call.1} parent=5 // pred_region
        // Predicated region
        $region17: #{tpu_custom_call.1} parent=15 // pred_check
          %p271 = pneg %p66
        $region18: #{tpu_custom_call.1} parent=15 // pred_check_branch
          %273 = sbr.rel (%p271) target = $region20
        $region19: #{tpu_custom_call.1} parent=15 // pred_region
          %s274 = sand.u32 %s56, 1
          %s275 = scalar_lea.sflag [#allocation5], %s274
          %s276 = sand.u32 %s56, 1
          %s277 = smul.addr %s276, 8
          %s278 = scalar_lea.vmem [#allocation4], %s277
          %s279 = sadd.s32 %s35, %s36
          %p280 = scmp.lt.s32.totalorder %s279, 0
          %s281 = scalar_select %p280, %s279, 0
          %283 = vsyncadd %s275, 0
          %s284 = smul.addr %s281, 8
          %s285 = scalar_lea.hbm %s0, %s284
          %s287 = sshll.u32 %s285, 4
          %s288 = int_to_ptr.hbm [resolvable:$true] %s287
          %s289 = sshll.u32 %s278, 4
          %s290 = int_to_ptr.vmem [resolvable:$true] %s289
          %292 = dma.hbm_to_vmem [thread:$0]  %s288, 128, %s290, %s275
        $region20: #{tpu_custom_call.1} parent=15 // pred_fallthru
          _
        // Predicated region
        $region21: #{tpu_custom_call.1} parent=15 // pred_check
          %p293 = pneg %p98
        $region22: #{tpu_custom_call.1} parent=15 // pred_check_branch
          %295 = sbr.rel (%p293) target = $region24
        $region23: #{tpu_custom_call.1} parent=15 // pred_region
          %s296 = sand.u32 %s28, 1
          %s297 = scalar_lea.sflag [#allocation8], %s296
          %s298 = sand.u32 %s88, 1
          %s299 = smul.addr %s298, 8
          %s300 = scalar_lea.vmem [#allocation7], %s299
          %s301 = sadd.s32 %s35, %s36
          %p302 = scmp.lt.s32.totalorder %s301, 0
          %s303 = scalar_select %p302, %s301, 0
          %305 = vsyncadd %s297, 0
          %s306 = smul.addr %s303, 8
          %s307 = scalar_lea.hbm %s1, %s306
          %s309 = sshll.u32 %s307, 4
          %s310 = int_to_ptr.hbm [resolvable:$true] %s309
          %s311 = sshll.u32 %s300, 4
          %s312 = int_to_ptr.vmem [resolvable:$true] %s311
          %314 = dma.hbm_to_vmem [thread:$0]  %s310, 128, %s312, %s297
        $region24: #{tpu_custom_call.1} parent=15 // pred_fallthru
          _
        // Predicated region
        $region25: #{tpu_custom_call.1} parent=15 // pred_check
          %p315 = pneg %p130
        $region26: #{tpu_custom_call.1} parent=15 // pred_check_branch
          %317 = sbr.rel (%p315) target = $region28
        $region27: #{tpu_custom_call.1} parent=15 // pred_region
          %s318 = sand.u32 %s28, 1
          %s319 = scalar_lea.sflag [#allocation8], %s318
          %s320 = sand.u32 %s120, 1
          %s321 = smul.addr %s320, 8
          %s322 = scalar_lea.vmem [#allocation9], %s321
          %s323 = sadd.s32 %s35, %s36
          %p324 = scmp.lt.s32.totalorder %s323, 0
          %s325 = scalar_select %p324, %s323, 0
          %s326 = smul.u32 2, %s325
          %s327 = ssub.s32 1, %s326
          %s328 = smul.u32 4, %s327
          %s329 = ssub.s32 8, %s328
          %s330 = sshll.u32 %s329, 4
          %331 = vsyncadd %s319, %s330
          %p332 = scmp.ne.s32.totalorder 0, %s328
          %s333 = smul.addr %s326, 4
          %s334 = scalar_lea.hbm %s2, %s333
          %s335 = smul.u32 4, %s327
          %s336 = sshll.u32 %s334, 4
          %s337 = int_to_ptr.hbm [resolvable:$true] %s336
          %s338 = sshll.u32 %s322, 4
          %s339 = int_to_ptr.vmem [resolvable:$true] %s338
          %s340 = sshll.u32 %s335, 4
          %344 = dma.hbm_to_vmem [thread:$0]  (%p332), %s337, %s340, %s339, %s319, 64, 64, 4
        $region28: #{tpu_custom_call.1} parent=15 // pred_fallthru
          _
        // Predicated region
        $region29: #{tpu_custom_call.1} parent=15 // pred_check
          %p345 = pneg %p162
        $region30: #{tpu_custom_call.1} parent=15 // pred_check_branch
          %347 = sbr.rel (%p345) target = $region32
        $region31: #{tpu_custom_call.1} parent=15 // pred_region
          %s348 = sand.u32 %s28, 1
          %s349 = scalar_lea.sflag [#allocation11], %s348
          %s350 = sand.u32 %s152, 1
          %s351 = smul.addr %s350, 8
          %s352 = scalar_lea.vmem [#allocation10], %s351
          %s353 = sadd.s32 %s35, %s36
          %p354 = scmp.lt.s32.totalorder %s353, 0
          %s355 = scalar_select %p354, %s353, 0
          %s356 = smul.u32 2, %s355
          %s357 = ssub.s32 1, %s356
          %s358 = smul.u32 4, %s357
          %s359 = ssub.s32 8, %s358
          %s360 = sshll.u32 %s359, 4
          %361 = vsyncadd %s349, %s360
          %p362 = scmp.ne.s32.totalorder 0, %s358
          %s363 = smul.addr %s356, 4
          %s364 = scalar_lea.hbm %s3, %s363
          %s365 = smul.u32 4, %s357
          %s366 = sshll.u32 %s364, 4
          %s367 = int_to_ptr.hbm [resolvable:$true] %s366
          %s368 = sshll.u32 %s352, 4
          %s369 = int_to_ptr.vmem [resolvable:$true] %s368
          %s370 = sshll.u32 %s365, 4
          %374 = dma.hbm_to_vmem [thread:$0]  (%p362), %s367, %s370, %s369, %s349, 64, 64, 4
        $region32: #{tpu_custom_call.1} parent=15 // pred_fallthru
          _
        // Predicated region
        $region33: #{tpu_custom_call.1} parent=15 // pred_check
          %p375 = pneg %p194
        $region34: #{tpu_custom_call.1} parent=15 // pred_check_branch
          %377 = sbr.rel (%p375) target = $region36
        $region35: #{tpu_custom_call.1} parent=15 // pred_region
          %s378 = sand.u32 %s28, 1
          %s379 = scalar_lea.sflag [#allocation11], %s378
          %s380 = sand.u32 %s184, 1
          %s381 = smul.addr %s380, 8
          %s382 = scalar_lea.vmem [#allocation12], %s381
          %s383 = sadd.s32 %s35, %s36
          %p384 = scmp.lt.s32.totalorder %s383, 0
          %s385 = scalar_select %p384, %s383, 0
          %s386 = smul.u32 2, %s385
          %s387 = ssub.s32 1, %s386
          %s388 = smul.u32 4, %s387
          %s389 = ssub.s32 8, %s388
          %s390 = sshll.u32 %s389, 4
          %391 = vsyncadd %s379, %s390
          %p392 = scmp.ne.s32.totalorder 0, %s388
          %s393 = smul.addr %s386, 4
          %s394 = scalar_lea.hbm %s4, %s393
          %s395 = smul.u32 4, %s387
          %s396 = sshll.u32 %s394, 4
          %s397 = int_to_ptr.hbm [resolvable:$true] %s396
          %s398 = sshll.u32 %s382, 4
          %s399 = int_to_ptr.vmem [resolvable:$true] %s398
          %s400 = sshll.u32 %s395, 4
          %404 = dma.hbm_to_vmem [thread:$0]  (%p392), %s397, %s400, %s399, %s379, 64, 64, 4
        $region36: #{tpu_custom_call.1} parent=15 // pred_fallthru
          _
      $region16: #{tpu_custom_call.1} parent=5 // pred_fallthru
        _
      %p405 = scmp.le.s32.totalorder 1, %s28
      %p406 = scmp.lt.s32.totalorder %s28, 3
      %p407 = pnand %p405, %p406
      %p408 = pneg %p407
      // Predicated region
      $region37: #{tpu_custom_call.1} parent=5 // pred_check
        _
      $region38: #{tpu_custom_call.1} parent=5 // pred_check_branch
        %410 = sbr.rel (%p407) target = $region40
      $region39: #{tpu_custom_call.1} parent=5 // pred_region
        %s411 = ssub.s32 %s28, 1
        %s412 = sand.u32 %s59, 1
        %s413 = scalar_lea.sflag [#allocation5], %s412
        %s414 = sand.u32 %s59, 1
        %s415 = smul.addr %s414, 8
        %s416 = scalar_lea.vmem [#allocation4], %s415
        // Predicated region
        $region41: #{tpu_custom_call.1} parent=39 // pred_check
          %p417 = pneg %p72
        $region42: #{tpu_custom_call.1} parent=39 // pred_check_branch
          %419 = sbr.rel (%p417) target = $region44
        $region43: #{tpu_custom_call.1} parent=39 // pred_region
          %421 = dma.done %s413, 128
        $region44: #{tpu_custom_call.1} parent=39 // pred_fallthru
          _
        %s422 = sand.u32 %s33, 1
        %s423 = scalar_lea.sflag [#allocation8], %s422
        %s424 = sand.u32 %s91, 1
        %s425 = smul.addr %s424, 8
        %s426 = scalar_lea.vmem [#allocation7], %s425
        // Predicated region
        $region45: #{tpu_custom_call.1} parent=39 // pred_check
          %p427 = pneg %p104
        $region46: #{tpu_custom_call.1} parent=39 // pred_check_branch
          %429 = sbr.rel (%p427) target = $region48
        $region47: #{tpu_custom_call.1} parent=39 // pred_region
          %431 = dma.done %s423, 128
        $region48: #{tpu_custom_call.1} parent=39 // pred_fallthru
          _
        %s432 = sand.u32 %s33, 1
        %s433 = scalar_lea.sflag [#allocation8], %s432
        %s434 = sand.u32 %s123, 1
        %s435 = smul.addr %s434, 8
        %s436 = scalar_lea.vmem [#allocation9], %s435
        // Predicated region
        $region49: #{tpu_custom_call.1} parent=39 // pred_check
          %p437 = pneg %p136
        $region50: #{tpu_custom_call.1} parent=39 // pred_check_branch
          %439 = sbr.rel (%p437) target = $region52
        $region51: #{tpu_custom_call.1} parent=39 // pred_region
          %441 = dma.done %s433, 128
        $region52: #{tpu_custom_call.1} parent=39 // pred_fallthru
          _
        %s442 = sand.u32 %s33, 1
        %s443 = scalar_lea.sflag [#allocation11], %s442
        %s444 = sand.u32 %s155, 1
        %s445 = smul.addr %s444, 8
        %s446 = scalar_lea.vmem [#allocation10], %s445
        // Predicated region
        $region53: #{tpu_custom_call.1} parent=39 // pred_check
          %p447 = pneg %p168
        $region54: #{tpu_custom_call.1} parent=39 // pred_check_branch
          %449 = sbr.rel (%p447) target = $region56
        $region55: #{tpu_custom_call.1} parent=39 // pred_region
          %451 = dma.done %s443, 128
        $region56: #{tpu_custom_call.1} parent=39 // pred_fallthru
          _
        %s452 = sand.u32 %s33, 1
        %s453 = scalar_lea.sflag [#allocation11], %s452
        %s454 = sand.u32 %s187, 1
        %s455 = smul.addr %s454, 8
        %s456 = scalar_lea.vmem [#allocation12], %s455
        // Predicated region
        $region57: #{tpu_custom_call.1} parent=39 // pred_check
          %p457 = pneg %p200
        $region58: #{tpu_custom_call.1} parent=39 // pred_check_branch
          %459 = sbr.rel (%p457) target = $region60
        $region59: #{tpu_custom_call.1} parent=39 // pred_region
          %461 = dma.done %s453, 128
        $region60: #{tpu_custom_call.1} parent=39 // pred_fallthru
          _
        %s462 = sand.u32 %s59, 1
        %s463 = scalar_lea.sflag [#allocation5], %s462
        %s464 = sand.u32 %s59, 1
        %s465 = smul.addr %s464, 8
        %s466 = scalar_lea.vmem [#allocation4], %s465
        %p467 = pneg %p72
        %p468 = pneg %p69
        %s469 = sand.u32 %s33, 1
        %s470 = scalar_lea.sflag [#allocation8], %s469
        %s471 = sand.u32 %s91, 1
        %s472 = smul.addr %s471, 8
        %s473 = scalar_lea.vmem [#allocation7], %s472
        %p474 = pneg %p104
        %p475 = pneg %p101
        %s476 = sand.u32 %s33, 1
        %s477 = scalar_lea.sflag [#allocation8], %s476
        %s478 = sand.u32 %s123, 1
        %s479 = smul.addr %s478, 8
        %s480 = scalar_lea.vmem [#allocation9], %s479
        %p481 = pneg %p136
        %p482 = pneg %p133
        %s483 = sand.u32 %s33, 1
        %s484 = scalar_lea.sflag [#allocation11], %s483
        %s485 = sand.u32 %s155, 1
        %s486 = smul.addr %s485, 8
        %s487 = scalar_lea.vmem [#allocation10], %s486
        %p488 = pneg %p168
        %p489 = pneg %p165
        %s490 = sand.u32 %s33, 1
        %s491 = scalar_lea.sflag [#allocation11], %s490
        %s492 = sand.u32 %s187, 1
        %s493 = smul.addr %s492, 8
        %s494 = scalar_lea.vmem [#allocation12], %s493
        %p495 = pneg %p200
        %p496 = pneg %p197
        %p497 = pneg %p226
        %p498 = pneg %p223
        %s499 = sand.u32 %s213, 1
        %s500 = scalar_lea.sflag [#allocation6], %s499
        %s501 = sand.u32 %s213, 1
        %s502 = smul.addr %s501, 8
        %s503 = scalar_lea.vmem [#allocation13], %s502
        %p504 = pneg %p252
        %p505 = pneg %p249
        %s506 = sand.u32 %s239, 1
        %s507 = scalar_lea.sflag [#allocation15], %s506
        %s508 = sand.u32 %s239, 1
        %s509 = smul.addr %s508, 8
        %s510 = scalar_lea.vmem [#allocation14], %s509
        %s511 = sadd.s32 %s37, %s38
        %p512 = scmp.lt.s32.totalorder %s511, 0
        %s513 = scalar_select %p512, %s511, 0
        %s514 = sadd.s32 %s37, %s38
        %p515 = scmp.lt.s32.totalorder %s514, 0
        %s516 = scalar_select %p515, %s514, 0
        %s517 = sadd.s32 %s37, %s38
        %p518 = scmp.lt.s32.totalorder %s517, 0
        %s519 = scalar_select %p518, %s517, 0
        %s520 = smul.u32 2, %s519
        %s521 = ssub.s32 1, %s520
        %s522 = smul.u32 4, %s521
        %s523 = sadd.s32 %s37, %s38
        %p524 = scmp.lt.s32.totalorder %s523, 0
        %s525 = scalar_select %p524, %s523, 0
        %s526 = smul.u32 2, %s525
        %s527 = ssub.s32 1, %s526
        %s528 = smul.u32 4, %s527
        %s529 = sadd.s32 %s37, %s38
        %p530 = scmp.lt.s32.totalorder %s529, 0
        %s531 = scalar_select %p530, %s529, 0
        %s532 = smul.u32 2, %s531
        %s533 = ssub.s32 1, %s532
        %s534 = smul.u32 4, %s533
        %p535 = scmp.eq.s32.totalorder %s38, 0
        // Predicated region
        $region61: #{tpu_custom_call.1} parent=39 // pred_check
          %p536 = pneg %p535
        $region62: #{tpu_custom_call.1} parent=39 // pred_check_branch
          %538 = sbr.rel (%p536) target = $region64
        $region63: #{tpu_custom_call.1} parent=39 // pred_region
          %539 = vst [vmem:[#allocation2] sm:$0xff] 0.0
          %540 = vst [vmem:[#allocation3] sm:$0xff] 0.0
        $region64: #{tpu_custom_call.1} parent=39 // pred_fallthru
          _
        %s541 = sadd.s32 %s37, %s38
        %p542 = scmp.lt.s32.totalorder %s38, 1
        %p543 = scmp.lt.s32.totalorder %s541, 1
        %p544 = pnand %p542, %p543
        %p545 = pneg %p544
        // Predicated region
        $region65: #{tpu_custom_call.1} parent=39 // pred_check
          _
        $region66: #{tpu_custom_call.1} parent=39 // pred_check_branch
          %547 = sbr.rel (%p544) target = $region68
        $region67: #{tpu_custom_call.1} parent=39 // pred_region
          %v548 = vld [vmem:[%s416] sm:$0xff]
          %v549 = vld [vmem:[%s426] sm:$0xff]
          %v550 = vsub.f32 %v548, %v549
          %v551 = vand.u32 2147483647, %v550
          %p552 = scmp.eq.s32.totalorder %s541, 0
          // Predicated region
          $region69: #{tpu_custom_call.1} parent=67 // pred_check
            %p553 = pneg %p552
          $region70: #{tpu_custom_call.1} parent=67 // pred_check_branch
            %555 = sbr.rel (%p553) target = $region72
          $region71: #{tpu_custom_call.1} parent=67 // pred_region
            %v556 = vlaneseq
            %v557 = vshrl.u32 %v556, 7
            %s558 = smul.u32 %s541, 8
            %v559 = vstv %s558
            %v560 = vadd.s32 %v557, %v559
            %vm561 = vcmp.lt.s32.totalorder %v560, 6
            %v562 = vsel %vm561, %v551, 0.0
            %v563 = vld [vmem:[#allocation2] sm:$0xff]
            %v564 = vadd.f32 %v562, 0.0
            %v565 = vadd.f32 %v563, %v564
            %566 = vst [vmem:[#allocation2] sm:$0xff] %v565
          $region72: #{tpu_custom_call.1} parent=67 // pred_fallthru
            _
          %p567 = scmp.ne.s32.totalorder %s541, 0
          // Predicated region
          $region73: #{tpu_custom_call.1} parent=67 // pred_check
            %p568 = pneg %p567
          $region74: #{tpu_custom_call.1} parent=67 // pred_check_branch
            %570 = sbr.rel (%p568) target = $region76
          $region75: #{tpu_custom_call.1} parent=67 // pred_region
            %v571 = vld [vmem:[#allocation2] sm:$0xff]
            %v572 = vadd.f32 %v551, 0.0
            %v573 = vadd.f32 %v571, %v572
            %574 = vst [vmem:[#allocation2] sm:$0xff] %v573
          $region76: #{tpu_custom_call.1} parent=67 // pred_fallthru
            _
          %v575 = vld [vmem:[%s436] sm:$0xff]
          %v576 = vld [vmem:[%s446] sm:$0xff]
          %v577 = vld [vmem:[%s456] sm:$0xff]
          %v578 = vmul.f32 %v575, %v575
          %v579 = vmul.f32 %v576, %v576
          %v580 = vadd.f32 %v578, %v579
          %v581 = vmul.f32 %v577, %v577
          %v582 = vadd.f32 %v580, %v581
          %v583 = vrsqrt.pop %v582
          %v584 = vmul.f32 %v583, %v582
          %v585 = vmul.f32 %v584, %v583
          %v586 = vmul.f32 0.5, %v585
          %v587 = vsub.f32 1.5, %v586
          %v588 = vmul.f32 %v583, %v587
          %v589 = vmul.f32 %v582, %v588
          %vm590 = vcmp.eq.f32.partialorder %v582, inf
          %v591 = vsel %vm590, %v582, %v589
          %vm592 = vcmp.eq.f32.partialorder %v582, 0.0
          %v593 = vand.u32 %v582, 2147483648
          %v594 = vsel %vm592, %v593, %v591
          %v595 = vsub.f32 %v594, 1.0
          %v596 = vmul.f32 %v595, %v595
          // Predicated region
          $region77: #{tpu_custom_call.1} parent=67 // pred_check
            %p597 = pneg %p552
          $region78: #{tpu_custom_call.1} parent=67 // pred_check_branch
            %599 = sbr.rel (%p597) target = $region80
          $region79: #{tpu_custom_call.1} parent=67 // pred_region
            %v600 = vlaneseq
            %v601 = vshrl.u32 %v600, 7
            %s602 = smul.u32 %s541, 8
            %v603 = vstv %s602
            %v604 = vadd.s32 %v601, %v603
            %vm605 = vcmp.lt.s32.totalorder %v604, 3
            %v606 = vsel %vm605, %v596, 0.0
            %v607 = vld [vmem:[#allocation3] sm:$0xff]
            %v608 = vadd.f32 %v606, 0.0
            %v609 = vadd.f32 %v607, %v608
            %610 = vst [vmem:[#allocation3] sm:$0xff] %v609
          $region80: #{tpu_custom_call.1} parent=67 // pred_fallthru
            _
          // Predicated region
          $region81: #{tpu_custom_call.1} parent=67 // pred_check
            %p611 = pneg %p567
          $region82: #{tpu_custom_call.1} parent=67 // pred_check_branch
            %613 = sbr.rel (%p611) target = $region84
          $region83: #{tpu_custom_call.1} parent=67 // pred_region
            %v614 = vld [vmem:[#allocation3] sm:$0xff]
            %v615 = vadd.f32 %v596, 0.0
            %v616 = vadd.f32 %v614, %v615
            %617 = vst [vmem:[#allocation3] sm:$0xff] %v616
          $region84: #{tpu_custom_call.1} parent=67 // pred_fallthru
            _
        $region68: #{tpu_custom_call.1} parent=39 // pred_fallthru
          _
        // Predicated region
        $region85: #{tpu_custom_call.1} parent=39 // pred_check
          %p618 = pneg %p535
        $region86: #{tpu_custom_call.1} parent=39 // pred_check_branch
          %620 = sbr.rel (%p618) target = $region88
        $region87: #{tpu_custom_call.1} parent=39 // pred_region
          %v621 = vld [vmem:[#allocation2] sm:$0xff]
          %622 = vst [vmem:[%s503] sm:$0xff] %v621
          %v623 = vld [vmem:[#allocation3] sm:$0xff]
          %624 = vst [vmem:[%s510] sm:$0xff] %v623
        $region88: #{tpu_custom_call.1} parent=39 // pred_fallthru
          _
        %s625 = sand.u32 %s213, 1
        %s626 = scalar_lea.sflag [#allocation6], %s625
        %s627 = sand.u32 %s213, 1
        %s628 = smul.addr %s627, 8
        %s629 = scalar_lea.vmem [#allocation13], %s628
        %s630 = sand.u32 %s239, 1
        %s631 = scalar_lea.sflag [#allocation15], %s630
        %s632 = sand.u32 %s239, 1
        %s633 = smul.addr %s632, 8
        %s634 = scalar_lea.vmem [#allocation14], %s633
        // Predicated region
        $region89: #{tpu_custom_call.1} parent=39 // pred_check
          %p635 = pneg %p223
        $region90: #{tpu_custom_call.1} parent=39 // pred_check_branch
          %637 = sbr.rel (%p635) target = $region92
        $region91: #{tpu_custom_call.1} parent=39 // pred_region
          %639 = vsyncadd %s626, 0
          %s640 = smul.addr %s37, 8
          %s641 = scalar_lea.hbm %s5, %s640
          %s643 = sshll.u32 %s629, 4
          %s644 = int_to_ptr.vmem [resolvable:$true] %s643
          %s645 = sshll.u32 %s641, 4
          %s646 = int_to_ptr.hbm [resolvable:$true] %s645
          %648 = dma.vmem_to_hbm [thread:$0]  %s644, 128, %s646, %s626
        $region92: #{tpu_custom_call.1} parent=39 // pred_fallthru
          _
        // Predicated region
        $region93: #{tpu_custom_call.1} parent=39 // pred_check
          %p649 = pneg %p249
        $region94: #{tpu_custom_call.1} parent=39 // pred_check_branch
          %651 = sbr.rel (%p649) target = $region96
        $region95: #{tpu_custom_call.1} parent=39 // pred_region
          %653 = vsyncadd %s631, 0
          %s654 = smul.addr %s37, 8
          %s655 = scalar_lea.hbm %s6, %s654
          %s657 = sshll.u32 %s634, 4
          %s658 = int_to_ptr.vmem [resolvable:$true] %s657
          %s659 = sshll.u32 %s655, 4
          %s660 = int_to_ptr.hbm [resolvable:$true] %s659
          %662 = dma.vmem_to_hbm [thread:$0]  %s658, 128, %s660, %s631
        $region96: #{tpu_custom_call.1} parent=39 // pred_fallthru
          _
      $region40: #{tpu_custom_call.1} parent=5 // pred_fallthru
        _
      %p663 = scmp.le.s32.totalorder 2, %s28
      // Predicated region
      $region97: #{tpu_custom_call.1} parent=5 // pred_check
        %p664 = pneg %p663
      $region98: #{tpu_custom_call.1} parent=5 // pred_check_branch
        %666 = sbr.rel (%p664) target = $region100
      $region99: #{tpu_custom_call.1} parent=5 // pred_region
        %s667 = ssub.s32 %s28, 2
        // Predicated region
        $region101: #{tpu_custom_call.1} parent=99 // pred_check
          %p668 = pneg %p229
        $region102: #{tpu_custom_call.1} parent=99 // pred_check_branch
          %670 = sbr.rel (%p668) target = $region104
        $region103: #{tpu_custom_call.1} parent=99 // pred_region
          %s671 = sand.u32 %s214, 1
          %s672 = scalar_lea.sflag [#allocation6], %s671
          %s673 = sand.u32 %s214, 1
          %s674 = smul.addr %s673, 8
          %s675 = scalar_lea.vmem [#allocation13], %s674
          %677 = dma.done %s672, 128
        $region104: #{tpu_custom_call.1} parent=99 // pred_fallthru
          _
        // Predicated region
        $region105: #{tpu_custom_call.1} parent=99 // pred_check
          %p678 = pneg %p255
        $region106: #{tpu_custom_call.1} parent=99 // pred_check_branch
          %680 = sbr.rel (%p678) target = $region108
        $region107: #{tpu_custom_call.1} parent=99 // pred_region
          %s681 = sand.u32 %s240, 1
          %s682 = scalar_lea.sflag [#allocation15], %s681
          %s683 = sand.u32 %s240, 1
          %s684 = smul.addr %s683, 8
          %s685 = scalar_lea.vmem [#allocation14], %s684
          %687 = dma.done %s682, 128
        $region108: #{tpu_custom_call.1} parent=99 // pred_fallthru
          _
      $region100: #{tpu_custom_call.1} parent=5 // pred_fallthru
        _
    $region6: #{tpu_custom_call.1} parent=1 // loop_footer
      %s32 = sadd.s32 1, %s28
    $region7: #{tpu_custom_call.1} parent=1 // loop_footer_branch
      %27 = sbr.rel target = $region3
    $region8: #{tpu_custom_call.1} parent=1 // loop_exit
      _
    %688 = vsyncpa [#allocation5], 1
    %s689 = scalar_lea.sflag [#allocation5], 1
    %690 = vsyncpa %s689, 1
    %691 = vsyncpa [#allocation8], 1
    %s692 = scalar_lea.sflag [#allocation8], 1
    %693 = vsyncpa %s692, 1
    %694 = vsyncpa [#allocation11], 1
    %s695 = scalar_lea.sflag [#allocation11], 1
    %696 = vsyncpa %s695, 1
    %697 = vsyncpa [#allocation6], 1
    %s698 = scalar_lea.sflag [#allocation6], 1
    %699 = vsyncpa %s698, 1
    %700 = vsyncpa [#allocation15], 1
    %s701 = scalar_lea.sflag [#allocation15], 1
    %702 = vsyncpa %s701, 1

</llo_original>
